<compile_context>
chip_gen: v5e
topology: v5e:2x2
jax: 0.10.0
libtpu: 0.0.40
codegen_flags: <defaults>
</compile_context>

<pallas_src>
import functools

import jax
import jax.numpy as jnp
from jax import lax
from jax.experimental import pallas as pl
from jax.experimental.pallas import tpu as pltpu


def _round_up(x, m):
    return ((x + m - 1) // m) * m


def _focal_kernel(alpha_ref, logit_ref, tidx_ref, out_ref, *, gamma, smooth,
                  n_valid, block_n, need_mask):
    i = pl.program_id(0)

    logit = logit_ref[...].astype(jnp.float32)      # [C, TN]  (classes x rows)
    tidx = tidx_ref[...]                            # [1, TN]  int32 class index
    alpha = alpha_ref[...].astype(jnp.float32)      # [C, 1]

    c, tn = logit.shape

    # one-hot over the class (sublane) axis: onehot[k, j] = (k == tidx[j])
    cls_iota = lax.broadcasted_iota(jnp.int32, (c, tn), 0)
    onehot = (cls_iota == tidx).astype(jnp.float32)                 # [C, TN]

    # softmax pieces without materializing prob; reductions over sublanes.
    m = jnp.max(logit, axis=0, keepdims=True)                       # [1, TN]
    e = jnp.exp(logit - m)                                          # [C, TN]
    denom = jnp.sum(e, axis=0, keepdims=True)                       # [1, TN]
    numer = jnp.sum(e * onehot, axis=0, keepdims=True)              # [1, TN]
    pt = numer * pl.reciprocal(denom, approx=True) + smooth         # [1, TN]

    alpha_w = jnp.sum(alpha * onehot, axis=0, keepdims=True)        # [1, TN]

    logpt = jnp.log(pt)
    one_minus = 1.0 - pt

    # integer gamma -> repeated multiply (VPU only, no NaN when pt + smooth > 1);
    # non-integer gamma falls back to generic pow (faithful to torch).
    if float(gamma) == int(gamma) and int(gamma) >= 0:
        g = int(gamma)
        if g == 0:
            pw = jnp.ones_like(pt)
        else:
            pw = one_minus
            for _ in range(g - 1):
                pw = pw * one_minus
    else:
        pw = one_minus ** gamma

    loss = -alpha_w * pw * logpt                                    # [1, TN]

    if need_mask:
        # zero out padded batch rows so they don't contribute to the mean
        col = lax.broadcasted_iota(jnp.int32, (1, tn), 1) + i * block_n
        loss = jnp.where(col < n_valid, loss, 0.0)

    # per-block partial sum (final mean done once in the wrapper)
    out_ref[...] = jnp.sum(loss, axis=1, keepdims=True).reshape(1, 1, 1)


def multi_focal_loss(logit, target, alpha, *, gamma=2, smooth=1e-4,
                     block_n=None):
    """logit: [N, C]; target: [N, C] scores (argmax'ed); alpha: [C]. Returns scalar."""
    n, c = logit.shape

    # argmax over class scores once in XLA (first-occurrence, matches torch);
    # the kernel only streams int32 indices -> ~half the HBM read traffic.
    tidx = jnp.argmax(target, axis=1).astype(jnp.int32)             # [N]

    # lane-dense layout: classes on sublanes, batch rows on lanes.
    logit_t = jnp.transpose(logit)                                  # [C, N]
    alpha2d = alpha.astype(jnp.float32).reshape(c, 1)               # [C, 1]

    # choose a lane-aligned batch tile.  Target ~2 MiB of logit per tile so the
    # double-buffered working set (~4.5 MiB) fits every chip's default scoped
    # VMEM while per-step overhead is fully amortized.
    if block_n is None:
        tile_bytes = 2 * 1024 * 1024
        blk = max(128, (tile_bytes // max(c * 4, 1)) // 128 * 128)
    else:
        blk = max(128, _round_up(block_n, 128))
    blk = min(blk, _round_up(n, 128))
    n_pad = _round_up(n, blk)

    if n_pad != n:
        logit_t = jnp.pad(logit_t, ((0, 0), (0, n_pad - n)))
        tidx = jnp.pad(tidx, (0, n_pad - n))
    tidx2d = tidx.reshape(1, n_pad)

    grid = n_pad // blk
    kernel = functools.partial(
        _focal_kernel, gamma=gamma, smooth=float(smooth),
        n_valid=n, block_n=blk, need_mask=(n_pad != n))

    partials = pl.pallas_call(
        kernel,
        out_shape=jax.ShapeDtypeStruct((grid, 1, 1), jnp.float32),
        grid=(grid,),
        in_specs=[
            pl.BlockSpec((c, 1), lambda i: (0, 0)),        # alpha   [C, 1]
            pl.BlockSpec((c, blk), lambda i: (0, i)),      # logit^T [C, blk]
            pl.BlockSpec((1, blk), lambda i: (0, i)),      # indices [1, blk]
        ],
        out_specs=pl.BlockSpec((1, 1, 1), lambda i: (i, 0, 0)),
        compiler_params=pltpu.CompilerParams(
            dimension_semantics=("parallel",)),   # no carried state -> TC-parallel
    )(alpha2d, logit_t, tidx2d)

    # mean over the *real* batch size (padded rows were masked to 0)
    return jnp.sum(partials) / jnp.float32(n)


def _reference(logit, target, alpha, gamma=2, smooth=1e-4):
    idx = jnp.argmax(target, axis=1)
    prob = jax.nn.softmax(logit.astype(jnp.float32), axis=1)
    pt = jnp.take_along_axis(prob, idx[:, None], axis=1)[:, 0] + smooth
    aw = alpha[idx]
    loss = -aw * ((1.0 - pt) ** gamma) * jnp.log(pt)
    return jnp.mean(loss)


if __name__ == "__main__":
    num_class = 8
    gamma = 2
    n = 300  # deliberately not a multiple of 128 to exercise padding + masking

    key = jax.random.PRNGKey(0)
    k1, k2 = jax.random.split(key)

    logit = jax.random.normal(k1, (n, num_class), dtype=jnp.float32)
    cls = jax.random.randint(k2, (n,), 0, num_class)
    target = jax.nn.one_hot(cls, num_class, dtype=jnp.float32)

    # default alpha init from __init__: torch.ones(num_class) - 0.5
    alpha = jnp.ones((num_class,), dtype=jnp.float32) - 0.5

    ref = _reference(logit, target, alpha, gamma=gamma)

    # auto-sized single-block path
    loss = multi_focal_loss(logit, target, alpha, gamma=gamma)
    loss = jax.block_until_ready(loss)
    assert jnp.allclose(loss, ref, rtol=1e-2, atol=1e-3), (loss, ref)

    # multi-block path (grid > 1, masked tail block)
    loss2 = multi_focal_loss(logit, target, alpha, gamma=gamma, block_n=128)
    loss2 = jax.block_until_ready(loss2)
    assert jnp.allclose(loss2, ref, rtol=1e-2, atol=1e-3), (loss2, ref)

    print("KERNEL_OK")
</pallas_src>

<mosaic_0001>
module attributes {stable_mosaic.version = 11 : i64} {
  func.func @_focal_kernel(%arg0: i32, %arg1: memref<8x1xf32, #tpu.memory_space<vmem>>, %arg2: memref<8x384xf32, #tpu.memory_space<vmem>>, %arg3: memref<1x384xi32, #tpu.memory_space<vmem>>, %arg4: memref<1x1x1xf32, #tpu.memory_space<vmem>>) attributes {dimension_semantics = [#tpu.dimension_semantics<parallel>], iteration_bounds = array<i64: 1>, scalar_prefetch = 0 : i64, scratch_operands = 0 : i64, tpu.core_type = #tpu.core_type<tc>, window_params = [{pipeline_mode = #tpu.pipeline_mode<synchronous>, transform_indices = @transform_0, window_bounds = array<i64: 8, 1>}, {transform_indices = @transform_1, window_bounds = array<i64: 8, 384>}, {transform_indices = @transform_2, window_bounds = array<i64: 1, 384>}, {transform_indices = @transform_3, window_bounds = array<i64: 1, 1, 1>}]} {
    %c0 = arith.constant 0 : index
    %c0_0 = arith.constant 0 : index
    %0 = vector.load %arg2[%c0, %c0_0] : memref<8x384xf32, #tpu.memory_space<vmem>>, vector<8x384xf32>
    %c0_1 = arith.constant 0 : index
    %c0_2 = arith.constant 0 : index
    %1 = vector.load %arg3[%c0_1, %c0_2] : memref<1x384xi32, #tpu.memory_space<vmem>>, vector<1x384xi32>
    %c0_3 = arith.constant 0 : index
    %c0_4 = arith.constant 0 : index
    %2 = vector.load %arg1[%c0_3, %c0_4] : memref<8x1xf32, #tpu.memory_space<vmem>>, vector<8x1xf32>
    %3 = tpu.iota {dimensions = array<i32: 0>} : vector<8x384xi32>
    %4 = vector.broadcast %1 : vector<1x384xi32> to vector<8x384xi32>
    %5 = arith.cmpi eq, %3, %4 : vector<8x384xi32>
    %6 = arith.extui %5 : vector<8x384xi1> to vector<8x384xi32>
    %7 = arith.sitofp %6 : vector<8x384xi32> to vector<8x384xf32>
    %cst = arith.constant dense<0xFF800000> : vector<384xf32>
    %8 = vector.multi_reduction <maximumf>, %0, %cst [0] : vector<8x384xf32> to vector<384xf32>
    %9 = vector.shape_cast %8 : vector<384xf32> to vector<1x384xf32>
    %10 = vector.broadcast %9 : vector<1x384xf32> to vector<8x384xf32>
    %11 = arith.subf %0, %10 : vector<8x384xf32>
    %12 = math.exp %11 : vector<8x384xf32>
    %cst_5 = arith.constant dense<0.000000e+00> : vector<384xf32>
    %13 = vector.multi_reduction <add>, %12, %cst_5 [0] : vector<8x384xf32> to vector<384xf32>
    %14 = vector.shape_cast %13 : vector<384xf32> to vector<1x384xf32>
    %15 = arith.mulf %12, %7 : vector<8x384xf32>
    %cst_6 = arith.constant dense<0.000000e+00> : vector<384xf32>
    %16 = vector.multi_reduction <add>, %15, %cst_6 [0] : vector<8x384xf32> to vector<384xf32>
    %17 = vector.shape_cast %16 : vector<384xf32> to vector<1x384xf32>
    %18 = tpu.reciprocal %14 {approx = true} : vector<1x384xf32> -> vector<1x384xf32>
    %19 = arith.mulf %17, %18 : vector<1x384xf32>
    %cst_7 = arith.constant 9.99999974E-5 : f32
    %20 = vector.broadcast %cst_7 : f32 to vector<1x384xf32>
    %21 = arith.addf %19, %20 : vector<1x384xf32>
    %22 = vector.broadcast %2 : vector<8x1xf32> to vector<8x384xf32>
    %23 = arith.mulf %22, %7 : vector<8x384xf32>
    %cst_8 = arith.constant dense<0.000000e+00> : vector<384xf32>
    %24 = vector.multi_reduction <add>, %23, %cst_8 [0] : vector<8x384xf32> to vector<384xf32>
    %25 = vector.shape_cast %24 : vector<384xf32> to vector<1x384xf32>
    %26 = math.log %21 : vector<1x384xf32>
    %cst_9 = arith.constant 1.000000e+00 : f32
    %27 = vector.broadcast %cst_9 : f32 to vector<1x384xf32>
    %28 = arith.subf %27, %21 : vector<1x384xf32>
    %29 = arith.mulf %28, %28 : vector<1x384xf32>
    %cst_10 = arith.constant 0.000000e+00 : f32
    %30 = vector.broadcast %cst_10 : f32 to vector<1x384xf32>
    %31 = arith.subf %30, %25 : vector<1x384xf32>
    %32 = arith.mulf %31, %29 : vector<1x384xf32>
    %33 = arith.mulf %32, %26 : vector<1x384xf32>
    %34 = tpu.iota {dimensions = array<i32: 1>} : vector<1x384xi32>
    %c384_i32 = arith.constant 384 : i32
    %35 = arith.muli %arg0, %c384_i32 : i32
    %36 = vector.broadcast %35 : i32 to vector<1x384xi32>
    %37 = arith.addi %34, %36 : vector<1x384xi32>
    %c300_i32 = arith.constant 300 : i32
    %38 = vector.broadcast %c300_i32 : i32 to vector<1x384xi32>
    %39 = arith.cmpi slt, %37, %38 : vector<1x384xi32>
    %cst_11 = arith.constant 0.000000e+00 : f32
    %40 = vector.broadcast %cst_11 : f32 to vector<1x384xf32>
    %41 = arith.select %39, %33, %40 : vector<1x384xi1>, vector<1x384xf32>
    %cst_12 = arith.constant dense<0.000000e+00> : vector<1xf32>
    %42 = vector.multi_reduction <add>, %41, %cst_12 [1] : vector<1x384xf32> to vector<1xf32>
    %43 = vector.shape_cast %42 : vector<1xf32> to vector<1x1xf32>
    %44 = vector.shape_cast %43 : vector<1x1xf32> to vector<1x1x1xf32>
    %c0_13 = arith.constant 0 : index
    %c0_14 = arith.constant 0 : index
    %c0_15 = arith.constant 0 : index
    %45 = vector.load %arg4[%c0_13, %c0_14, %c0_15] : memref<1x1x1xf32, #tpu.memory_space<vmem>>, vector<1x1x1xf32>
    tpu.vector_store %arg4[%c0_13, %c0_14, %c0_15], %44 {strides = array<i32>} : memref<1x1x1xf32, #tpu.memory_space<vmem>>, vector<1x1x1xf32>,
    return
  }
  func.func @transform_0(%arg0: i32) -> (i32, i32) {
    %c0_i32 = arith.constant 0 : i32
    %c0_i32_0 = arith.constant 0 : i32
    %c0_i32_1 = arith.constant 0 : i32
    return %c0_i32, %c0_i32_0 : i32, i32
  }
  func.func @transform_1(%arg0: i32) -> (i32, i32) {
    %c0_i32 = arith.constant 0 : i32
    %c0_i32_0 = arith.constant 0 : i32
    return %c0_i32, %arg0 : i32, i32
  }
  func.func @transform_2(%arg0: i32) -> (i32, i32) {
    %c0_i32 = arith.constant 0 : i32
    %c0_i32_0 = arith.constant 0 : i32
    return %c0_i32, %arg0 : i32, i32
  }
  func.func @transform_3(%arg0: i32) -> (i32, i32, i32) {
    %c0_i32 = arith.constant 0 : i32
    %c0_i32_0 = arith.constant 0 : i32
    %c0_i32_1 = arith.constant 0 : i32
    return %arg0, %c0_i32, %c0_i32_0 : i32, i32, i32
  }
}

</mosaic_0001>

<llo_original>
// kernel: tpu_custom_call.1
$region0: #{tpu_custom_call.1}
  #allocation0 [shape = 'u32[]', space=smem, size = 0x4, offset = 0x4, fixed_abs, tag = 'smem constant byte address 0x4 - core index']
  #allocation1 [shape = 'u32[72,128]{1,0:T(1,128)}', space=vmem, size = 0x9000, scoped, tag = 'internal scratch']
  %s0 = inlined_call_operand.vmem [shape: f32[8,1], index: 0, kind: input, shape index: {}]
  %s1 = inlined_call_operand.hbm [shape: f32[8,384], index: 1, kind: input, shape index: {}]
  %s2 = inlined_call_operand.vmem [shape: s32[1,384], index: 2, kind: input, shape index: {}]
  %s3 = inlined_call_operand.hbm [shape: f32[1,1,1], index: 3, kind: output, shape index: {}]
  %s4 = sld [smem:[#allocation0]]
  $region26: #{tpu_custom_call.1} parent=0
    _
  %s6 = ssub.s32 1, %s4
  %s7 = scalar_select 0, %s6, %s4
  $region1: #{tpu_custom_call.1} parent=0
    #allocation2 [shape = 'u8[12288]{0}', space=vmem, size = 0x3000, scoped, tag = 'input window, operand 1, single buffered']
    #allocation3 [shape = 's32[1]{0}', space=sflag, size = 0x4, scoped, tag = 'scoped memory for tpu_custom_call.1']
    #allocation4 [shape = 's32[1]{0}', space=sflag, size = 0x4, scoped, tag = 'scoped memory for tpu_custom_call.1']
    #allocation5 [shape = 'u8[512]{0}', space=vmem, size = 0x400, scoped, tag = 'output window, operand 0, single buffered']
    %8 = vsyncpa [#allocation3], 0
    %9 = vsyncpa [#allocation4], 0
    // Predicated region
    $region2: #{tpu_custom_call.1} parent=1 // pred_check
      _
    $region3: #{tpu_custom_call.1} parent=1 // pred_check_branch
      %11 = sbr.rel (0) target = $region5
    $region4: #{tpu_custom_call.1} parent=1 // pred_region
      _
    $region5: #{tpu_custom_call.1} parent=1 // pred_fallthru
      _
    // Predicated region
    $region6: #{tpu_custom_call.1} parent=1 // pred_check
      _
    $region7: #{tpu_custom_call.1} parent=1 // pred_check_branch
      %13 = sbr.rel (0) target = $region9
    $region8: #{tpu_custom_call.1} parent=1 // pred_region
      %15 = vsyncadd [#allocation3], 0
      %s17 = sshll.u32 %s1, 4
      %s18 = int_to_ptr.hbm [resolvable:$true] %s17
      %s19 = sshll.u32 [#allocation2], 4
      %s20 = int_to_ptr.vmem [resolvable:$true] %s19
      %22 = dma.hbm_to_vmem [thread:$0]  %s18, 384, %s20, [#allocation3]
    $region9: #{tpu_custom_call.1} parent=1 // pred_fallthru
      _
    // Predicated region
    $region10: #{tpu_custom_call.1} parent=1 // pred_check
      _
    $region11: #{tpu_custom_call.1} parent=1 // pred_check_branch
      %24 = sbr.rel (0) target = $region13
    $region12: #{tpu_custom_call.1} parent=1 // pred_region
      _
    $region13: #{tpu_custom_call.1} parent=1 // pred_fallthru
      _
    // Predicated region
    $region14: #{tpu_custom_call.1} parent=1 // pred_check
      _
    $region15: #{tpu_custom_call.1} parent=1 // pred_check_branch
      %26 = sbr.rel (0) target = $region17
    $region16: #{tpu_custom_call.1} parent=1 // pred_region
      %28 = dma.done [#allocation3], 384
    $region17: #{tpu_custom_call.1} parent=1 // pred_fallthru
      _
    %v29 = vld [vmem:[#allocation2] sm:$0xff]
    %v30 = vld [vmem:[#allocation2 + $0x8] sm:$0xff]
    %v31 = vld [vmem:[#allocation2 + $0x10] sm:$0xff]
    %v32 = vld [vmem:[%s2] sm:$0x7]
    %v33 = vld [vmem:[%s0] sm:$0xff]
    %v34 = vlaneseq
    %v35 = vshrl.u32 %v34, 7
    %v36 = vperm.slane %v32, 0
    %v37 = vperm.slane %v32, 1
    %v38 = vperm.slane %v32, 2
    %vm39 = vcmp.eq.s32.totalorder %v35, %v36
    %vm40 = vcmp.eq.s32.totalorder %v35, %v37
    %vm41 = vcmp.eq.s32.totalorder %v35, %v38
    %v42 = vsel %vm39, 1, 0
    %v43 = vsel %vm40, 1, 0
    %v44 = vsel %vm41, 1, 0
    %v45 = vcvt.s32.f32 %v42
    %v46 = vcvt.s32.f32 %v43
    %v47 = vcvt.s32.f32 %v44
    %v48 = vrot.slane %v29, 4
    %v49 = vmax.f32 %v29, %v48
    %v50 = vrot.slane %v49, 2
    %v51 = vmax.f32 %v49, %v50
    %v52 = vrot.slane %v51, 1
    %v53 = vmax.f32 %v51, %v52
    %v54 = vrot.slane %v30, 4
    %v55 = vmax.f32 %v30, %v54
    %v56 = vrot.slane %v55, 2
    %v57 = vmax.f32 %v55, %v56
    %v58 = vrot.slane %v57, 1
    %v59 = vmax.f32 %v57, %v58
    %v60 = vrot.slane %v31, 4
    %v61 = vmax.f32 %v31, %v60
    %v62 = vrot.slane %v61, 2
    %v63 = vmax.f32 %v61, %v62
    %v64 = vrot.slane %v63, 1
    %v65 = vmax.f32 %v63, %v64
    %v66 = vsub.f32 %v29, %v53
    %v67 = vsub.f32 %v30, %v59
    %v68 = vsub.f32 %v31, %v65
    %v69 = vmul.f32 %v66, 1.442695
    %v70 = vpow.pop %v69
    %v71 = vmul.f32 %v67, 1.442695
    %v72 = vpow.pop %v71
    %v73 = vmul.f32 %v68, 1.442695
    %v74 = vpow.pop %v73
    %v75 = vrot.slane %v70, 4
    %v76 = vadd.f32 %v70, %v75
    %v77 = vrot.slane %v76, 2
    %v78 = vadd.f32 %v76, %v77
    %v79 = vrot.slane %v78, 1
    %v80 = vadd.f32 %v78, %v79
    %v81 = vrot.slane %v72, 4
    %v82 = vadd.f32 %v72, %v81
    %v83 = vrot.slane %v82, 2
    %v84 = vadd.f32 %v82, %v83
    %v85 = vrot.slane %v84, 1
    %v86 = vadd.f32 %v84, %v85
    %v87 = vrot.slane %v74, 4
    %v88 = vadd.f32 %v74, %v87
    %v89 = vrot.slane %v88, 2
    %v90 = vadd.f32 %v88, %v89
    %v91 = vrot.slane %v90, 1
    %v92 = vadd.f32 %v90, %v91
    %v93 = vmul.f32 %v70, %v45
    %v94 = vmul.f32 %v72, %v46
    %v95 = vmul.f32 %v74, %v47
    %v96 = vrot.slane %v93, 4
    %v97 = vadd.f32 %v93, %v96
    %v98 = vrot.slane %v97, 2
    %v99 = vadd.f32 %v97, %v98
    %v100 = vrot.slane %v99, 1
    %v101 = vadd.f32 %v99, %v100
    %v102 = vrot.slane %v94, 4
    %v103 = vadd.f32 %v94, %v102
    %v104 = vrot.slane %v103, 2
    %v105 = vadd.f32 %v103, %v104
    %v106 = vrot.slane %v105, 1
    %v107 = vadd.f32 %v105, %v106
    %v108 = vrot.slane %v95, 4
    %v109 = vadd.f32 %v95, %v108
    %v110 = vrot.slane %v109, 2
    %v111 = vadd.f32 %v109, %v110
    %v112 = vrot.slane %v111, 1
    %v113 = vadd.f32 %v111, %v112
    %v114 = vrcp.pop %v80
    %v115 = vrcp.pop %v86
    %v116 = vrcp.pop %v92
    %v117 = vmul.f32 %v101, %v114
    %v118 = vmul.f32 %v107, %v115
    %v119 = vmul.f32 %v113, %v116
    %v120 = vadd.f32 %v117, 0.0001
    %v121 = vadd.f32 %v118, 0.0001
    %v122 = vadd.f32 %v119, 0.0001
    %124 = vset.pattern.permute.xlu0 0
    %125 = vperm.xlu0 %124, %v33
    %v126 = vpop.permute.xlu0 %125
    %v128 = vmul.f32 %v126, %v45
    %v129 = vmul.f32 %v126, %v46
    %v130 = vmul.f32 %v126, %v47
    %v131 = vrot.slane %v128, 4
    %v132 = vadd.f32 %v128, %v131
    %v133 = vrot.slane %v132, 2
    %v134 = vadd.f32 %v132, %v133
    %v135 = vrot.slane %v134, 1
    %v136 = vadd.f32 %v134, %v135
    %v137 = vrot.slane %v129, 4
    %v138 = vadd.f32 %v129, %v137
    %v139 = vrot.slane %v138, 2
    %v140 = vadd.f32 %v138, %v139
    %v141 = vrot.slane %v140, 1
    %v142 = vadd.f32 %v140, %v141
    %v143 = vrot.slane %v130, 4
    %v144 = vadd.f32 %v130, %v143
    %v145 = vrot.slane %v144, 2
    %v146 = vadd.f32 %v144, %v145
    %v147 = vrot.slane %v146, 1
    %v148 = vadd.f32 %v146, %v147
    %v149 = vlog2.pop %v120
    %v150 = vmul.f32 %v149, 0.6931472
    %v151 = vlog2.pop %v121
    %v152 = vmul.f32 %v151, 0.6931472
    %v153 = vlog2.pop %v122
    %v154 = vmul.f32 %v153, 0.6931472
    %v155 = vsub.f32 1.0, %v120
    %v156 = vsub.f32 1.0, %v121
    %v157 = vsub.f32 1.0, %v122
    %v158 = vmul.f32 %v155, %v155
    %v159 = vmul.f32 %v156, %v156
    %v160 = vmul.f32 %v157, %v157
    %v161 = vsub.f32 0.0, %v136
    %v162 = vsub.f32 0.0, %v142
    %v163 = vsub.f32 0.0, %v148
    %v164 = vmul.f32 %v161, %v158
    %v165 = vmul.f32 %v162, %v159
    %v166 = vmul.f32 %v163, %v160
    %v167 = vmul.f32 %v164, %v150
    %v168 = vmul.f32 %v165, %v152
    %v169 = vmul.f32 %v166, %v154
    %v170 = vlaneseq
    %v171 = vand.u32 %v170, 127
    %v172 = vadd.s32 %v171, 128
    %v173 = vadd.s32 %v171, 256
    %s174 = smul.u32 0, 384
    %v175 = vstv %s174
    %v176 = vadd.s32 %v171, %v175
    %v177 = vadd.s32 %v172, %v175
    %v178 = vadd.s32 %v173, %v175
    %vm179 = vcmp.lt.s32.totalorder %v176, 300
    %vm180 = vcmp.lt.s32.totalorder %v177, 300
    %vm181 = vcmp.lt.s32.totalorder %v178, 300
    %v182 = vsel %vm179, %v167, 0.0
    %v183 = vsel %vm180, %v168, 0.0
    %v184 = vsel %vm181, %v169, 0.0
    %v185 = vadd.f32 %v182, %v183
    %v186 = vadd.f32 %v185, %v184
    %187 = vadd.xlane.f32.xlu0 %v186
    %v188 = vpop.xlane.xlu0 %187
    %vm189 = vcmask 0
    %190 = vst.msk [vmem:[#allocation5] sm:$0x1] %vm189, %v188
    // Predicated region
    $region18: #{tpu_custom_call.1} parent=1 // pred_check
      _
    $region19: #{tpu_custom_call.1} parent=1 // pred_check_branch
      %192 = sbr.rel (0) target = $region21
    $region20: #{tpu_custom_call.1} parent=1 // pred_region
      %194 = vsyncadd [#allocation4], 0
      %s196 = sshll.u32 [#allocation5], 4
      %s197 = int_to_ptr.vmem [resolvable:$true] %s196
      %s198 = sshll.u32 %s3, 4
      %s199 = int_to_ptr.hbm [resolvable:$true] %s198
      %201 = dma.vmem_to_hbm [thread:$0]  %s197, 16, %s199, [#allocation4]
    $region21: #{tpu_custom_call.1} parent=1 // pred_fallthru
      _
    // Predicated region
    $region22: #{tpu_custom_call.1} parent=1 // pred_check
      _
    $region23: #{tpu_custom_call.1} parent=1 // pred_check_branch
      %203 = sbr.rel (0) target = $region25
    $region24: #{tpu_custom_call.1} parent=1 // pred_region
      %205 = dma.done [#allocation4], 16
    $region25: #{tpu_custom_call.1} parent=1 // pred_fallthru
      _
    %206 = vsyncpa [#allocation3], 1
    %207 = vsyncpa [#allocation4], 1

</llo_original>
